<compile_context>
chip_gen: v5e
topology: v5e:2x2
jax: 0.10.0
libtpu: 0.0.40
codegen_flags: <defaults>
</compile_context>

<pallas_src>
import jax
import jax.numpy as jnp
from jax.experimental import pallas as pl
from jax.experimental.pallas import tpu as pltpu

F32 = jnp.float32

IMAGE_RGB_MEAN = (0.485, 0.456, 0.406)
IMAGE_RGB_STD = (0.229, 0.224, 0.225)

_CPARAMS = pltpu.CompilerParams(
    dimension_semantics=("parallel",),       # shard lane-tiles across v7x's 2 TCs
    vmem_limit_bytes=32 * 1024 * 1024,       # safe on v5e/v6e (128 MiB) and v7x (64 MiB)
)


def _rgb_norm_kernel(x_ref, scale_ref, shift_ref, o_ref):
    # y = (x - mean) / std  ==  x * (1/std) + (-mean/std); one VPU pass.
    o_ref[...] = (x_ref[...].astype(F32) * scale_ref[...]
                  + shift_ref[...]).astype(o_ref.dtype)


def _pick_lane_tile(length, max_tile=8192):
    """Largest multiple-of-128 divisor of `length` that is <= max_tile.

    Falls back to the full dimension (always a legal block) when `length`
    is not 128-aligned.
    """
    if length % 128 != 0:
        return length
    best = 128
    t = 128
    while t <= min(length, max_tile):
        if length % t == 0:
            best = t
        t += 128
    return best


def rgb_normalize(x_nchw, mean=IMAGE_RGB_MEAN, std=IMAGE_RGB_STD):
    """Pallas forward of the RGB module: (x - mean[c]) / std[c], NCHW in/out."""
    N, C, H, W = x_nchw.shape
    M, L = N * C, H * W

    mean = jnp.asarray(mean, F32)
    std = jnp.asarray(std, F32)
    scale = jnp.tile(1.0 / std, N).reshape(M, 1)      # [N*C, 1] per-row 1/std
    shift = jnp.tile(-mean / std, N).reshape(M, 1)    # [N*C, 1] per-row -mean/std

    x2d = x_nchw.reshape(M, L)    # metadata-only reshape (NCHW is row-major)

    TL = _pick_lane_tile(L)       # lane-dense tile, 128-aligned when possible
    grid = (L // TL,)

    out = pl.pallas_call(
        _rgb_norm_kernel,
        grid=grid,
        in_specs=[
            pl.BlockSpec((M, TL), lambda j: (0, j)),   # activation tile
            pl.BlockSpec((M, 1), lambda j: (0, 0)),    # per-row scale (resident)
            pl.BlockSpec((M, 1), lambda j: (0, 0)),    # per-row shift (resident)
        ],
        out_specs=pl.BlockSpec((M, TL), lambda j: (0, j)),
        out_shape=jax.ShapeDtypeStruct((M, L), x_nchw.dtype),
        compiler_params=_CPARAMS,
    )(x2d, scale, shift)
    return out.reshape(N, C, H, W)


if __name__ == "__main__":
    key = jax.random.PRNGKey(0)
    x = jax.random.uniform(key, (2, 3, 16, 16), F32)   # NCHW, 3 RGB channels

    y = jax.jit(rgb_normalize)(x)
    y = jax.block_until_ready(y)

    # Reference: exactly what the PyTorch RGB module computes.
    mean = jnp.asarray(IMAGE_RGB_MEAN, F32).reshape(1, 3, 1, 1)
    std = jnp.asarray(IMAGE_RGB_STD, F32).reshape(1, 3, 1, 1)
    ref = (x - mean) / std

    assert y.shape == x.shape and y.dtype == x.dtype
    assert bool(jnp.all(jnp.isfinite(y)))
    assert bool(jnp.max(jnp.abs(y - ref)) < 1e-5)
    print("KERNEL_OK")
</pallas_src>

<mosaic_0001>
module attributes {stable_mosaic.version = 11 : i64} {
  func.func @_rgb_norm_kernel(%arg0: i32, %arg1: memref<6x256xf32, #tpu.memory_space<vmem>>, %arg2: memref<6x1xf32, #tpu.memory_space<vmem>>, %arg3: memref<6x1xf32, #tpu.memory_space<vmem>>, %arg4: memref<6x256xf32, #tpu.memory_space<vmem>>) attributes {dimension_semantics = [#tpu.dimension_semantics<parallel>], iteration_bounds = array<i64: 1>, scalar_prefetch = 0 : i64, scratch_operands = 0 : i64, tpu.core_type = #tpu.core_type<tc>, window_params = [{transform_indices = @transform_0, window_bounds = array<i64: 6, 256>}, {pipeline_mode = #tpu.pipeline_mode<synchronous>, transform_indices = @transform_1, window_bounds = array<i64: 6, 1>}, {pipeline_mode = #tpu.pipeline_mode<synchronous>, transform_indices = @transform_2, window_bounds = array<i64: 6, 1>}, {transform_indices = @transform_3, window_bounds = array<i64: 6, 256>}]} {
    %c0 = arith.constant 0 : index
    %c0_0 = arith.constant 0 : index
    %0 = vector.load %arg1[%c0, %c0_0] : memref<6x256xf32, #tpu.memory_space<vmem>>, vector<6x256xf32>
    %c0_1 = arith.constant 0 : index
    %c0_2 = arith.constant 0 : index
    %1 = vector.load %arg2[%c0_1, %c0_2] : memref<6x1xf32, #tpu.memory_space<vmem>>, vector<6x1xf32>
    %2 = vector.broadcast %1 : vector<6x1xf32> to vector<6x256xf32>
    %3 = arith.mulf %0, %2 : vector<6x256xf32>
    %c0_3 = arith.constant 0 : index
    %c0_4 = arith.constant 0 : index
    %4 = vector.load %arg3[%c0_3, %c0_4] : memref<6x1xf32, #tpu.memory_space<vmem>>, vector<6x1xf32>
    %5 = vector.broadcast %4 : vector<6x1xf32> to vector<6x256xf32>
    %6 = arith.addf %3, %5 : vector<6x256xf32>
    %c0_5 = arith.constant 0 : index
    %c0_6 = arith.constant 0 : index
    %7 = vector.load %arg4[%c0_5, %c0_6] : memref<6x256xf32, #tpu.memory_space<vmem>>, vector<6x256xf32>
    tpu.vector_store %arg4[%c0_5, %c0_6], %6 {strides = array<i32>} : memref<6x256xf32, #tpu.memory_space<vmem>>, vector<6x256xf32>,
    return
  }
  func.func @transform_0(%arg0: i32) -> (i32, i32) {
    %c0_i32 = arith.constant 0 : i32
    %c0_i32_0 = arith.constant 0 : i32
    return %c0_i32, %arg0 : i32, i32
  }
  func.func @transform_1(%arg0: i32) -> (i32, i32) {
    %c0_i32 = arith.constant 0 : i32
    %c0_i32_0 = arith.constant 0 : i32
    %c0_i32_1 = arith.constant 0 : i32
    return %c0_i32, %c0_i32_0 : i32, i32
  }
  func.func @transform_2(%arg0: i32) -> (i32, i32) {
    %c0_i32 = arith.constant 0 : i32
    %c0_i32_0 = arith.constant 0 : i32
    %c0_i32_1 = arith.constant 0 : i32
    return %c0_i32, %c0_i32_0 : i32, i32
  }
  func.func @transform_3(%arg0: i32) -> (i32, i32) {
    %c0_i32 = arith.constant 0 : i32
    %c0_i32_0 = arith.constant 0 : i32
    return %c0_i32, %arg0 : i32, i32
  }
}

</mosaic_0001>

<llo_original>
// kernel: tile.1
$region0: #{tile.1}
  %s0 = inlined_call_operand.vmem [shape: f32[2,3], index: 0, kind: input, shape index: {}]
  %s1 = inlined_call_operand.vmem [shape: f32[6,1], index: 1, kind: output, shape index: {}]
  $region1: #{tile.1} parent=0
    #allocation0 [shape = 'u8[4096]{0}', space=vmem, size = 0x1000, scoped, tag = 'scoped mem for input reshape']
    %s3 = ssub.s32 4, 1
    %v4 = vld [vmem:[%s0] sm:%s3]
    %5 = vst [vmem:[#allocation0] sm:%s3] %v4
    %v6 = vld [vmem:[#allocation0] sm:$0x3]
    %vm7 = vcmask 7168
    %8 = vst.msk [vmem:[%s1] ss:$3 sm:$0x3] %vm7, %v6
    %v9 = vld [vmem:[#allocation0] sm:$0x3]
    %10 = vrot.lane.b32.xlu0 %v9, 127
    %v11 = vpop.permute.xlu0 %10
    %vm12 = vcmask 7168
    %s13 = scalar_lea.vmem %s1, 1
    %14 = vst.msk [vmem:[%s13] ss:$3 sm:$0x3] %vm12, %v11
    %v15 = vld [vmem:[#allocation0] sm:$0x3]
    %16 = vrot.lane.b32.xlu0 %v15, 126
    %v17 = vpop.permute.xlu0 %16
    %vm18 = vcmask 7168
    %s19 = scalar_lea.vmem %s1, 2
    %20 = vst.msk [vmem:[%s19] ss:$3 sm:$0x3] %vm18, %v17

// kernel: tile.14
$region0: #{tile.14}
  #allocation0 [shape = 's32[1]{0}', space=sflag, size = 0x4, scoped, tag = 'scoped memory for tile.14']
  %s0 = inlined_call_operand.vmem [shape: f32[3], index: 0, kind: input, shape index: {}]
  %s1 = inlined_call_operand.vmem [shape: f32[2,3], index: 1, kind: output, shape index: {}]
  // Predicated region
  $region2: #{tile.14} parent=0 // pred_check
    _
  $region3: #{tile.14} parent=0 // pred_check_branch
    %3 = sbr.rel (0) target = $region5
  $region4: #{tile.14} parent=0 // pred_region
    _
  $region5: #{tile.14} parent=0 // pred_fallthru
    _
  %v4 = vld [vmem:[%s0] ss:$0 sm:$0xff]
  %5 = vst [vmem:[%s1] sm:$0x3] %v4

// kernel: rgb_normalize.1
$region0: #{rgb_normalize.1}
  #allocation0 [shape = 'u32[]', space=smem, size = 0x4, offset = 0x4, fixed_abs, tag = 'smem constant byte address 0x4 - core index']
  #allocation1 [shape = 'u32[72,128]{1,0:T(1,128)}', space=vmem, size = 0x9000, scoped, tag = 'internal scratch']
  %s0 = inlined_call_operand.vmem [shape: f32[6,256], index: 0, kind: input, shape index: {}]
  %s1 = inlined_call_operand.vmem [shape: f32[6,1], index: 1, kind: input, shape index: {}]
  %s2 = inlined_call_operand.vmem [shape: f32[6,1], index: 2, kind: input, shape index: {}]
  %s3 = inlined_call_operand.vmem [shape: f32[6,256], index: 3, kind: output, shape index: {}]
  %s4 = sld [smem:[#allocation0]]
  $region22: #{rgb_normalize.1} parent=0
    _
  %s6 = ssub.s32 1, %s4
  %s7 = scalar_select 0, %s6, %s4
  // Predicated region
  $region2: #{rgb_normalize.1} parent=0 // pred_check
    _
  $region3: #{rgb_normalize.1} parent=0 // pred_check_branch
    %9 = sbr.rel (0) target = $region5
  $region4: #{rgb_normalize.1} parent=0 // pred_region
    _
  $region5: #{rgb_normalize.1} parent=0 // pred_fallthru
    _
  // Predicated region
  $region6: #{rgb_normalize.1} parent=0 // pred_check
    _
  $region7: #{rgb_normalize.1} parent=0 // pred_check_branch
    %11 = sbr.rel (0) target = $region9
  $region8: #{rgb_normalize.1} parent=0 // pred_region
    _
  $region9: #{rgb_normalize.1} parent=0 // pred_fallthru
    _
  // Predicated region
  $region10: #{rgb_normalize.1} parent=0 // pred_check
    _
  $region11: #{rgb_normalize.1} parent=0 // pred_check_branch
    %13 = sbr.rel (0) target = $region13
  $region12: #{rgb_normalize.1} parent=0 // pred_region
    _
  $region13: #{rgb_normalize.1} parent=0 // pred_fallthru
    _
  %v14 = vld [vmem:[%s0] sm:$0x3f]
  %v15 = vld [vmem:[%s0 + $0x8] sm:$0x3f]
  %v16 = vld [vmem:[%s1] sm:$0x3f]
  %18 = vset.pattern.permute.xlu0 0
  %19 = vperm.xlu0 %18, %v16
  %v20 = vpop.permute.xlu0 %19
  %v22 = vmul.f32 %v14, %v20
  %v23 = vmul.f32 %v15, %v20
  %v24 = vld [vmem:[%s2] sm:$0x3f]
  %26 = vset.pattern.permute.xlu0 0
  %27 = vperm.xlu0 %26, %v24
  %v28 = vpop.permute.xlu0 %27
  %v30 = vadd.f32 %v22, %v28
  %v31 = vadd.f32 %v23, %v28
  %32 = vst [vmem:[%s3] sm:$0x3f] %v30
  %33 = vst [vmem:[%s3 + $0x8] sm:$0x3f] %v31
  // Predicated region
  $region14: #{rgb_normalize.1} parent=0 // pred_check
    _
  $region15: #{rgb_normalize.1} parent=0 // pred_check_branch
    %35 = sbr.rel (0) target = $region17
  $region16: #{rgb_normalize.1} parent=0 // pred_region
    _
  $region17: #{rgb_normalize.1} parent=0 // pred_fallthru
    _
  // Predicated region
  $region18: #{rgb_normalize.1} parent=0 // pred_check
    _
  $region19: #{rgb_normalize.1} parent=0 // pred_check_branch
    %37 = sbr.rel (0) target = $region21
  $region20: #{rgb_normalize.1} parent=0 // pred_region
    _
  $region21: #{rgb_normalize.1} parent=0 // pred_fallthru
    _

</llo_original>
